<compile_context>
chip_gen: v5e
topology: v5e:2x2
jax: 0.10.0
libtpu: 0.0.40
codegen_flags: <defaults>
</compile_context>

<pallas_src>
import jax
import jax.numpy as jnp
from jax import lax
from jax.experimental import pallas as pl
from jax.experimental.pallas import tpu as pltpu

HIDDEN = 32     # hidden_dim (small test size; module default is 256)
N_WORDS = 128   # vocabulary size
SEQ = 8         # target sentence length


# ----------------------------- Pallas kernel -------------------------------

def decoder_kernel(tokens_ref, emb_ref, wih_ref, whh_ref, bi_ref, bhn_ref,
                   h0_ref, wout_ref, bout_ref,
                   out_ref, hfin_ref):
    """Fused embed+relu -> GRU -> Linear -> LogSoftmax (batch=1, time-major).

    tokens_ref : (seq,) int32       SMEM token ids
    emb_ref    : (n_words, H)       embedding table
    wih_ref    : (H, GW)            fused input gate weights [r|z|n|pad], transposed
    whh_ref    : (H, GW)            fused recurrent gate weights [r|z|n|pad], transposed
    bi_ref     : (1, GW)            fused bias [b_ir+b_hr | b_iz+b_hz | b_in | 0]
    bhn_ref    : (1, H)             recurrent n-gate bias (stays inside r*(...))
    h0_ref     : (1, H)             initial hidden state
    wout_ref   : (H, n_words)       out.weight transposed
    bout_ref   : (1, n_words)
    out_ref    : (seq, n_words)     log-probabilities
    hfin_ref   : (1, H)             final hidden state
    """
    seq = out_ref.shape[0]
    H = h0_ref.shape[1]
    n_words = emb_ref.shape[0]

    # ---- Embedding gather + relu; rows stay in vregs (no scratch). --------
    rows = []
    for t in range(seq):                                     # static unroll
        tok = tokens_ref[t]
        tok = jnp.minimum(jnp.maximum(tok, 0), n_words - 1)  # OOB clamp
        rows.append(jnp.maximum(emb_ref[pl.ds(tok, 1), :], 0.0))
    x = jnp.concatenate(rows, axis=0)                        # (seq, H)

    # ---- One fused hoisted input projection (biases folded once). ---------
    gi = jnp.dot(x, wih_ref[...],
                 preferred_element_type=jnp.float32) + bi_ref[...]   # (seq, GW)
    whh = whh_ref[...]                                       # (H, GW) fused
    b_hn = bhn_ref[...]                                      # (1, H)

    # ---- Serial GRU recurrence: ONE matmul + ONE packed sigmoid per step. -
    h = h0_ref[...]                                          # (1, H)
    hs = []
    for t in range(seq):                                     # static unroll
        gh = jnp.dot(h, whh, preferred_element_type=jnp.float32)     # (1, GW)
        gi_t = gi[t:t + 1, :]
        rz = jax.nn.sigmoid(gi_t[:, 0:2 * H] + gh[:, 0:2 * H])       # (1, 2H)
        r = rz[:, 0:H]
        z = rz[:, H:2 * H]
        n = jnp.tanh(gi_t[:, 2 * H:3 * H] + r * (gh[:, 2 * H:3 * H] + b_hn))
        h = (1.0 - z) * n + z * h
        hs.append(h)
    hfin_ref[...] = h

    # ---- Output projection + log-softmax (lane-dense n_words output). -----
    hs_mat = jnp.concatenate(hs, axis=0)                     # (seq, H) in vregs
    logits = jnp.dot(hs_mat, wout_ref[...],
                     preferred_element_type=jnp.float32) + bout_ref[...]
    m = jnp.max(logits, axis=-1, keepdims=True)
    shifted = logits - m
    out_ref[...] = shifted - jnp.log(jnp.sum(jnp.exp(shifted), axis=-1,
                                             keepdims=True))


# ------------------------------ JAX wrapper --------------------------------

_VMEM = pl.BlockSpec(memory_space=pltpu.MemorySpace.VMEM)
_SMEM = pl.BlockSpec(memory_space=pltpu.MemorySpace.SMEM)


def prepare_decoder_params(params):
    """One-time param prep: gate fusion, transposes, bias folds, lane padding.

    Hoisted out of the per-call path so an autoregressive decode loop does not
    re-run these small XLA transpose/add/pad ops every step.
    """
    H = params["w_hh"].shape[1]
    n_words = params["w_out"].shape[0]
    GW = pl.cdiv(3 * H, 128) * 128                # fused gate width, lane-padded

    def pad_lanes(a):
        return jnp.pad(a, ((0, 0), (0, GW - 3 * H)))

    w_ih, w_hh = params["w_ih"], params["w_hh"]   # (3H, H), gate order r|z|n
    b_ih, b_hh = params["b_ih"], params["b_hh"]

    wih_f = pad_lanes(w_ih.T.astype(jnp.float32))            # (H, GW)
    whh_f = pad_lanes(w_hh.T.astype(jnp.float32))            # (H, GW)
    bi = jnp.concatenate([b_ih[0:H] + b_hh[0:H],
                          b_ih[H:2 * H] + b_hh[H:2 * H],
                          b_ih[2 * H:3 * H]]).reshape(1, 3 * H)
    bi = pad_lanes(bi.astype(jnp.float32))                   # (1, GW)
    bhn = b_hh[2 * H:3 * H].reshape(1, H).astype(jnp.float32)

    return {
        "emb": params["emb"].astype(jnp.float32),            # (n_words, H)
        "wih_f": wih_f, "whh_f": whh_f, "bi": bi, "bhn": bhn,
        "wout_t": params["w_out"].T.astype(jnp.float32),     # (H, n_words)
        "bout": params["b_out"].reshape(1, n_words).astype(jnp.float32),
        "H": H, "n_words": n_words,
    }


def decoder_forward(tokens, init_hidden_state, prepped):
    """tokens: int32[seq]; init_hidden_state: f32[1,1,H]; prepped params."""
    seq = tokens.shape[0]
    H = prepped["H"]
    n_words = prepped["n_words"]
    h0 = init_hidden_state.reshape(1, H).astype(jnp.float32)

    log_probs, h_final = pl.pallas_call(
        decoder_kernel,
        out_shape=(jax.ShapeDtypeStruct((seq, n_words), jnp.float32),
                   jax.ShapeDtypeStruct((1, H), jnp.float32)),
        in_specs=[_SMEM] + [_VMEM] * 8,
        out_specs=(_VMEM, _VMEM),
    )(tokens.astype(jnp.int32), prepped["emb"],
      prepped["wih_f"], prepped["whh_f"], prepped["bi"], prepped["bhn"],
      h0, prepped["wout_t"], prepped["bout"])

    # torch.squeeze(outputs, 0) -> (seq, n_words); hidden stays (1, 1, H)
    return log_probs, h_final.reshape(1, 1, H)


# --------------------------- pure-JAX reference -----------------------------

def decoder_forward_ref(tokens, init_hidden_state, params):
    H = params["w_hh"].shape[1]
    x = jnp.maximum(jnp.take(params["emb"], tokens, axis=0), 0.0)
    h0 = init_hidden_state.reshape(H)

    def step(h, x_t):
        gi = params["w_ih"] @ x_t + params["b_ih"]
        gh = params["w_hh"] @ h + params["b_hh"]
        r = jax.nn.sigmoid(gi[:H] + gh[:H])
        z = jax.nn.sigmoid(gi[H:2 * H] + gh[H:2 * H])
        n = jnp.tanh(gi[2 * H:] + r * gh[2 * H:])
        h_new = (1.0 - z) * n + z * h
        return h_new, h_new

    h_last, hs = lax.scan(step, h0, x)
    logits = hs @ params["w_out"].T + params["b_out"]
    logp = jax.nn.log_softmax(logits, axis=-1)
    return logp, h_last.reshape(1, 1, H)


# ------------------------------ param init ----------------------------------

def init_params(key, hidden_dim, n_words):
    ks = jax.random.split(key, 7)
    s = 0.1
    return {
        "emb":   jax.random.normal(ks[0], (n_words, hidden_dim), jnp.float32) * s,
        "w_ih":  jax.random.normal(ks[1], (3 * hidden_dim, hidden_dim), jnp.float32) * s,
        "w_hh":  jax.random.normal(ks[2], (3 * hidden_dim, hidden_dim), jnp.float32) * s,
        "b_ih":  jax.random.normal(ks[3], (3 * hidden_dim,), jnp.float32) * s,
        "b_hh":  jax.random.normal(ks[4], (3 * hidden_dim,), jnp.float32) * s,
        "w_out": jax.random.normal(ks[5], (n_words, hidden_dim), jnp.float32) * s,
        "b_out": jax.random.normal(ks[6], (n_words,), jnp.float32) * s,
    }


if __name__ == "__main__":
    key = jax.random.PRNGKey(0)
    kp, kt, kh = jax.random.split(key, 3)

    params = init_params(kp, HIDDEN, N_WORDS)
    tokens = jax.random.randint(kt, (SEQ,), 0, N_WORDS, dtype=jnp.int32)
    init_hidden = jax.random.normal(kh, (1, 1, HIDDEN), jnp.float32) * 0.1

    prepped = prepare_decoder_params(params)           # one-time param prep
    log_probs, h_final = decoder_forward(tokens, init_hidden, prepped)
    jax.block_until_ready((log_probs, h_final))

    lp_ref, h_ref = decoder_forward_ref(tokens, init_hidden, params)
    assert log_probs.shape == (SEQ, N_WORDS) and h_final.shape == (1, 1, HIDDEN)
    assert jnp.allclose(log_probs, lp_ref, atol=1e-4), "log-prob mismatch"
    assert jnp.allclose(h_final, h_ref, atol=1e-4), "hidden-state mismatch"

    print("KERNEL_OK")
</pallas_src>

<mosaic_0001>
module attributes {stable_mosaic.version = 11 : i64} {
  func.func @decoder_kernel(%arg0: memref<8xi32, #tpu.memory_space<smem>>, %arg1: memref<128x32xf32, #tpu.memory_space<vmem>>, %arg2: memref<32x128xf32, #tpu.memory_space<vmem>>, %arg3: memref<32x128xf32, #tpu.memory_space<vmem>>, %arg4: memref<1x128xf32, #tpu.memory_space<vmem>>, %arg5: memref<1x32xf32, #tpu.memory_space<vmem>>, %arg6: memref<1x32xf32, #tpu.memory_space<vmem>>, %arg7: memref<32x128xf32, #tpu.memory_space<vmem>>, %arg8: memref<1x128xf32, #tpu.memory_space<vmem>>, %arg9: memref<8x128xf32, #tpu.memory_space<vmem>>, %arg10: memref<1x32xf32, #tpu.memory_space<vmem>>) attributes {dimension_semantics = [], scalar_prefetch = 0 : i64, scratch_operands = 0 : i64, tpu.core_type = #tpu.core_type<tc>} {
    %c0 = arith.constant 0 : index
    %0 = memref.load %arg0[%c0] : memref<8xi32, #tpu.memory_space<smem>>
    %c0_i32 = arith.constant 0 : i32
    %1 = arith.maxsi %0, %c0_i32 : i32
    %c127_i32 = arith.constant 127 : i32
    %2 = arith.minsi %1, %c127_i32 : i32
    %3 = arith.index_cast %2 : i32 to index
    %c0_0 = arith.constant 0 : index
    %4 = vector.load %arg1[%3, %c0_0] : memref<128x32xf32, #tpu.memory_space<vmem>>, vector<1x32xf32>
    %cst = arith.constant 0.000000e+00 : f32
    %5 = vector.broadcast %cst : f32 to vector<1x32xf32>
    %6 = arith.maximumf %4, %5 : vector<1x32xf32>
    %c1 = arith.constant 1 : index
    %7 = memref.load %arg0[%c1] : memref<8xi32, #tpu.memory_space<smem>>
    %c0_i32_1 = arith.constant 0 : i32
    %8 = arith.maxsi %7, %c0_i32_1 : i32
    %c127_i32_2 = arith.constant 127 : i32
    %9 = arith.minsi %8, %c127_i32_2 : i32
    %10 = arith.index_cast %9 : i32 to index
    %c0_3 = arith.constant 0 : index
    %11 = vector.load %arg1[%10, %c0_3] : memref<128x32xf32, #tpu.memory_space<vmem>>, vector<1x32xf32>
    %cst_4 = arith.constant 0.000000e+00 : f32
    %12 = vector.broadcast %cst_4 : f32 to vector<1x32xf32>
    %13 = arith.maximumf %11, %12 : vector<1x32xf32>
    %c2 = arith.constant 2 : index
    %14 = memref.load %arg0[%c2] : memref<8xi32, #tpu.memory_space<smem>>
    %c0_i32_5 = arith.constant 0 : i32
    %15 = arith.maxsi %14, %c0_i32_5 : i32
    %c127_i32_6 = arith.constant 127 : i32
    %16 = arith.minsi %15, %c127_i32_6 : i32
    %17 = arith.index_cast %16 : i32 to index
    %c0_7 = arith.constant 0 : index
    %18 = vector.load %arg1[%17, %c0_7] : memref<128x32xf32, #tpu.memory_space<vmem>>, vector<1x32xf32>
    %cst_8 = arith.constant 0.000000e+00 : f32
    %19 = vector.broadcast %cst_8 : f32 to vector<1x32xf32>
    %20 = arith.maximumf %18, %19 : vector<1x32xf32>
    %c3 = arith.constant 3 : index
    %21 = memref.load %arg0[%c3] : memref<8xi32, #tpu.memory_space<smem>>
    %c0_i32_9 = arith.constant 0 : i32
    %22 = arith.maxsi %21, %c0_i32_9 : i32
    %c127_i32_10 = arith.constant 127 : i32
    %23 = arith.minsi %22, %c127_i32_10 : i32
    %24 = arith.index_cast %23 : i32 to index
    %c0_11 = arith.constant 0 : index
    %25 = vector.load %arg1[%24, %c0_11] : memref<128x32xf32, #tpu.memory_space<vmem>>, vector<1x32xf32>
    %cst_12 = arith.constant 0.000000e+00 : f32
    %26 = vector.broadcast %cst_12 : f32 to vector<1x32xf32>
    %27 = arith.maximumf %25, %26 : vector<1x32xf32>
    %c4 = arith.constant 4 : index
    %28 = memref.load %arg0[%c4] : memref<8xi32, #tpu.memory_space<smem>>
    %c0_i32_13 = arith.constant 0 : i32
    %29 = arith.maxsi %28, %c0_i32_13 : i32
    %c127_i32_14 = arith.constant 127 : i32
    %30 = arith.minsi %29, %c127_i32_14 : i32
    %31 = arith.index_cast %30 : i32 to index
    %c0_15 = arith.constant 0 : index
    %32 = vector.load %arg1[%31, %c0_15] : memref<128x32xf32, #tpu.memory_space<vmem>>, vector<1x32xf32>
    %cst_16 = arith.constant 0.000000e+00 : f32
    %33 = vector.broadcast %cst_16 : f32 to vector<1x32xf32>
    %34 = arith.maximumf %32, %33 : vector<1x32xf32>
    %c5 = arith.constant 5 : index
    %35 = memref.load %arg0[%c5] : memref<8xi32, #tpu.memory_space<smem>>
    %c0_i32_17 = arith.constant 0 : i32
    %36 = arith.maxsi %35, %c0_i32_17 : i32
    %c127_i32_18 = arith.constant 127 : i32
    %37 = arith.minsi %36, %c127_i32_18 : i32
    %38 = arith.index_cast %37 : i32 to index
    %c0_19 = arith.constant 0 : index
    %39 = vector.load %arg1[%38, %c0_19] : memref<128x32xf32, #tpu.memory_space<vmem>>, vector<1x32xf32>
    %cst_20 = arith.constant 0.000000e+00 : f32
    %40 = vector.broadcast %cst_20 : f32 to vector<1x32xf32>
    %41 = arith.maximumf %39, %40 : vector<1x32xf32>
    %c6 = arith.constant 6 : index
    %42 = memref.load %arg0[%c6] : memref<8xi32, #tpu.memory_space<smem>>
    %c0_i32_21 = arith.constant 0 : i32
    %43 = arith.maxsi %42, %c0_i32_21 : i32
    %c127_i32_22 = arith.constant 127 : i32
    %44 = arith.minsi %43, %c127_i32_22 : i32
    %45 = arith.index_cast %44 : i32 to index
    %c0_23 = arith.constant 0 : index
    %46 = vector.load %arg1[%45, %c0_23] : memref<128x32xf32, #tpu.memory_space<vmem>>, vector<1x32xf32>
    %cst_24 = arith.constant 0.000000e+00 : f32
    %47 = vector.broadcast %cst_24 : f32 to vector<1x32xf32>
    %48 = arith.maximumf %46, %47 : vector<1x32xf32>
    %c7 = arith.constant 7 : index
    %49 = memref.load %arg0[%c7] : memref<8xi32, #tpu.memory_space<smem>>
    %c0_i32_25 = arith.constant 0 : i32
    %50 = arith.maxsi %49, %c0_i32_25 : i32
    %c127_i32_26 = arith.constant 127 : i32
    %51 = arith.minsi %50, %c127_i32_26 : i32
    %52 = arith.index_cast %51 : i32 to index
    %c0_27 = arith.constant 0 : index
    %53 = vector.load %arg1[%52, %c0_27] : memref<128x32xf32, #tpu.memory_space<vmem>>, vector<1x32xf32>
    %cst_28 = arith.constant 0.000000e+00 : f32
    %54 = vector.broadcast %cst_28 : f32 to vector<1x32xf32>
    %55 = arith.maximumf %53, %54 : vector<1x32xf32>
    %56 = tpu.concatenate %6, %13, %20, %27, %34, %41, %48, %55 in 0 : vector<1x32xf32>, vector<1x32xf32>, vector<1x32xf32>, vector<1x32xf32>, vector<1x32xf32>, vector<1x32xf32>, vector<1x32xf32>, vector<1x32xf32> -> vector<8x32xf32>
    %c0_29 = arith.constant 0 : index
    %c0_30 = arith.constant 0 : index
    %57 = vector.load %arg2[%c0_29, %c0_30] : memref<32x128xf32, #tpu.memory_space<vmem>>, vector<32x128xf32>
    %cst_31 = arith.constant dense<0.000000e+00> : vector<8x128xf32>
    %58 = tpu.matmul %56, %57, %cst_31 {dimension_numbers = #tpu.dot_dimension_numbers<[1], [0], [0], [1], [0, 0, 1, 1], [], []>} : vector<8x32xf32>, vector<32x128xf32>, vector<8x128xf32> -> vector<8x128xf32>
    %c0_32 = arith.constant 0 : index
    %c0_33 = arith.constant 0 : index
    %59 = vector.load %arg4[%c0_32, %c0_33] : memref<1x128xf32, #tpu.memory_space<vmem>>, vector<1x128xf32>
    %60 = vector.broadcast %59 : vector<1x128xf32> to vector<8x128xf32>
    %61 = arith.addf %58, %60 : vector<8x128xf32>
    %c0_34 = arith.constant 0 : index
    %c0_35 = arith.constant 0 : index
    %62 = vector.load %arg3[%c0_34, %c0_35] : memref<32x128xf32, #tpu.memory_space<vmem>>, vector<32x128xf32>
    %c0_36 = arith.constant 0 : index
    %c0_37 = arith.constant 0 : index
    %63 = vector.load %arg5[%c0_36, %c0_37] : memref<1x32xf32, #tpu.memory_space<vmem>>, vector<1x32xf32>
    %c0_38 = arith.constant 0 : index
    %c0_39 = arith.constant 0 : index
    %64 = vector.load %arg6[%c0_38, %c0_39] : memref<1x32xf32, #tpu.memory_space<vmem>>, vector<1x32xf32>
    %cst_40 = arith.constant dense<0.000000e+00> : vector<1x128xf32>
    %65 = tpu.matmul %64, %62, %cst_40 {dimension_numbers = #tpu.dot_dimension_numbers<[1], [0], [0], [1], [0, 0, 1, 1], [], []>} : vector<1x32xf32>, vector<32x128xf32>, vector<1x128xf32> -> vector<1x128xf32>
    %66 = vector.extract_strided_slice %61 {offsets = [0, 0], sizes = [1, 128], strides = [1, 1]} : vector<8x128xf32> to vector<1x128xf32>
    %67 = vector.extract_strided_slice %66 {offsets = [0, 0], sizes = [1, 64], strides = [1, 1]} : vector<1x128xf32> to vector<1x64xf32>
    %68 = vector.extract_strided_slice %65 {offsets = [0, 0], sizes = [1, 64], strides = [1, 1]} : vector<1x128xf32> to vector<1x64xf32>
    %69 = arith.addf %67, %68 : vector<1x64xf32>
    %70 = arith.negf %69 : vector<1x64xf32>
    %71 = math.exp %70 : vector<1x64xf32>
    %cst_41 = arith.constant 1.000000e+00 : f32
    %72 = vector.broadcast %cst_41 : f32 to vector<1x64xf32>
    %73 = arith.addf %72, %71 : vector<1x64xf32>
    %74 = arith.divf %72, %73 : vector<1x64xf32>
    %75 = vector.extract_strided_slice %74 {offsets = [0, 0], sizes = [1, 32], strides = [1, 1]} : vector<1x64xf32> to vector<1x32xf32>
    %76 = vector.extract_strided_slice %74 {offsets = [0, 32], sizes = [1, 32], strides = [1, 1]} : vector<1x64xf32> to vector<1x32xf32>
    %77 = vector.extract_strided_slice %66 {offsets = [0, 64], sizes = [1, 32], strides = [1, 1]} : vector<1x128xf32> to vector<1x32xf32>
    %78 = vector.extract_strided_slice %65 {offsets = [0, 64], sizes = [1, 32], strides = [1, 1]} : vector<1x128xf32> to vector<1x32xf32>
    %79 = arith.addf %78, %63 : vector<1x32xf32>
    %80 = arith.mulf %75, %79 : vector<1x32xf32>
    %81 = arith.addf %77, %80 : vector<1x32xf32>
    %82 = math.tanh %81 : vector<1x32xf32>
    %cst_42 = arith.constant 1.000000e+00 : f32
    %83 = vector.broadcast %cst_42 : f32 to vector<1x32xf32>
    %84 = arith.subf %83, %76 : vector<1x32xf32>
    %85 = arith.mulf %84, %82 : vector<1x32xf32>
    %86 = arith.mulf %76, %64 : vector<1x32xf32>
    %87 = arith.addf %85, %86 : vector<1x32xf32>
    %cst_43 = arith.constant dense<0.000000e+00> : vector<1x128xf32>
    %88 = tpu.matmul %87, %62, %cst_43 {dimension_numbers = #tpu.dot_dimension_numbers<[1], [0], [0], [1], [0, 0, 1, 1], [], []>} : vector<1x32xf32>, vector<32x128xf32>, vector<1x128xf32> -> vector<1x128xf32>
    %89 = vector.extract_strided_slice %61 {offsets = [1, 0], sizes = [1, 128], strides = [1, 1]} : vector<8x128xf32> to vector<1x128xf32>
    %90 = vector.extract_strided_slice %89 {offsets = [0, 0], sizes = [1, 64], strides = [1, 1]} : vector<1x128xf32> to vector<1x64xf32>
    %91 = vector.extract_strided_slice %88 {offsets = [0, 0], sizes = [1, 64], strides = [1, 1]} : vector<1x128xf32> to vector<1x64xf32>
    %92 = arith.addf %90, %91 : vector<1x64xf32>
    %93 = arith.negf %92 : vector<1x64xf32>
    %94 = math.exp %93 : vector<1x64xf32>
    %cst_44 = arith.constant 1.000000e+00 : f32
    %95 = vector.broadcast %cst_44 : f32 to vector<1x64xf32>
    %96 = arith.addf %95, %94 : vector<1x64xf32>
    %97 = arith.divf %95, %96 : vector<1x64xf32>
    %98 = vector.extract_strided_slice %97 {offsets = [0, 0], sizes = [1, 32], strides = [1, 1]} : vector<1x64xf32> to vector<1x32xf32>
    %99 = vector.extract_strided_slice %97 {offsets = [0, 32], sizes = [1, 32], strides = [1, 1]} : vector<1x64xf32> to vector<1x32xf32>
    %100 = vector.extract_strided_slice %89 {offsets = [0, 64], sizes = [1, 32], strides = [1, 1]} : vector<1x128xf32> to vector<1x32xf32>
    %101 = vector.extract_strided_slice %88 {offsets = [0, 64], sizes = [1, 32], strides = [1, 1]} : vector<1x128xf32> to vector<1x32xf32>
    %102 = arith.addf %101, %63 : vector<1x32xf32>
    %103 = arith.mulf %98, %102 : vector<1x32xf32>
    %104 = arith.addf %100, %103 : vector<1x32xf32>
    %105 = math.tanh %104 : vector<1x32xf32>
    %cst_45 = arith.constant 1.000000e+00 : f32
    %106 = vector.broadcast %cst_45 : f32 to vector<1x32xf32>
    %107 = arith.subf %106, %99 : vector<1x32xf32>
    %108 = arith.mulf %107, %105 : vector<1x32xf32>
    %109 = arith.mulf %99, %87 : vector<1x32xf32>
    %110 = arith.addf %108, %109 : vector<1x32xf32>
    %cst_46 = arith.constant dense<0.000000e+00> : vector<1x128xf32>
    %111 = tpu.matmul %110, %62, %cst_46 {dimension_numbers = #tpu.dot_dimension_numbers<[1], [0], [0], [1], [0, 0, 1, 1], [], []>} : vector<1x32xf32>, vector<32x128xf32>, vector<1x128xf32> -> vector<1x128xf32>
    %112 = vector.extract_strided_slice %61 {offsets = [2, 0], sizes = [1, 128], strides = [1, 1]} : vector<8x128xf32> to vector<1x128xf32>
    %113 = vector.extract_strided_slice %112 {offsets = [0, 0], sizes = [1, 64], strides = [1, 1]} : vector<1x128xf32> to vector<1x64xf32>
    %114 = vector.extract_strided_slice %111 {offsets = [0, 0], sizes = [1, 64], strides = [1, 1]} : vector<1x128xf32> to vector<1x64xf32>
    %115 = arith.addf %113, %114 : vector<1x64xf32>
    %116 = arith.negf %115 : vector<1x64xf32>
    %117 = math.exp %116 : vector<1x64xf32>
    %cst_47 = arith.constant 1.000000e+00 : f32
    %118 = vector.broadcast %cst_47 : f32 to vector<1x64xf32>
    %119 = arith.addf %118, %117 : vector<1x64xf32>
    %120 = arith.divf %118, %119 : vector<1x64xf32>
    %121 = vector.extract_strided_slice %120 {offsets = [0, 0], sizes = [1, 32], strides = [1, 1]} : vector<1x64xf32> to vector<1x32xf32>
    %122 = vector.extract_strided_slice %120 {offsets = [0, 32], sizes = [1, 32], strides = [1, 1]} : vector<1x64xf32> to vector<1x32xf32>
    %123 = vector.extract_strided_slice %112 {offsets = [0, 64], sizes = [1, 32], strides = [1, 1]} : vector<1x128xf32> to vector<1x32xf32>
    %124 = vector.extract_strided_slice %111 {offsets = [0, 64], sizes = [1, 32], strides = [1, 1]} : vector<1x128xf32> to vector<1x32xf32>
    %125 = arith.addf %124, %63 : vector<1x32xf32>
    %126 = arith.mulf %121, %125 : vector<1x32xf32>
    %127 = arith.addf %123, %126 : vector<1x32xf32>
    %128 = math.tanh %127 : vector<1x32xf32>
    %cst_48 = arith.constant 1.000000e+00 : f32
    %129 = vector.broadcast %cst_48 : f32 to vector<1x32xf32>
    %130 = arith.subf %129, %122 : vector<1x32xf32>
    %131 = arith.mulf %130, %128 : vector<1x32xf32>
    %132 = arith.mulf %122, %110 : vector<1x32xf32>
    %133 = arith.addf %131, %132 : vector<1x32xf32>
    %cst_49 = arith.constant dense<0.000000e+00> : vector<1x128xf32>
    %134 = tpu.matmul %133, %62, %cst_49 {dimension_numbers = #tpu.dot_dimension_numbers<[1], [0], [0], [1], [0, 0, 1, 1], [], []>} : vector<1x32xf32>, vector<32x128xf32>, vector<1x128xf32> -> vector<1x128xf32>
    %135 = vector.extract_strided_slice %61 {offsets = [3, 0], sizes = [1, 128], strides = [1, 1]} : vector<8x128xf32> to vector<1x128xf32>
    %136 = vector.extract_strided_slice %135 {offsets = [0, 0], sizes = [1, 64], strides = [1, 1]} : vector<1x128xf32> to vector<1x64xf32>
    %137 = vector.extract_strided_slice %134 {offsets = [0, 0], sizes = [1, 64], strides = [1, 1]} : vector<1x128xf32> to vector<1x64xf32>
    %138 = arith.addf %136, %137 : vector<1x64xf32>
    %139 = arith.negf %138 : vector<1x64xf32>
    %140 = math.exp %139 : vector<1x64xf32>
    %cst_50 = arith.constant 1.000000e+00 : f32
    %141 = vector.broadcast %cst_50 : f32 to vector<1x64xf32>
    %142 = arith.addf %141, %140 : vector<1x64xf32>
    %143 = arith.divf %141, %142 : vector<1x64xf32>
    %144 = vector.extract_strided_slice %143 {offsets = [0, 0], sizes = [1, 32], strides = [1, 1]} : vector<1x64xf32> to vector<1x32xf32>
    %145 = vector.extract_strided_slice %143 {offsets = [0, 32], sizes = [1, 32], strides = [1, 1]} : vector<1x64xf32> to vector<1x32xf32>
    %146 = vector.extract_strided_slice %135 {offsets = [0, 64], sizes = [1, 32], strides = [1, 1]} : vector<1x128xf32> to vector<1x32xf32>
    %147 = vector.extract_strided_slice %134 {offsets = [0, 64], sizes = [1, 32], strides = [1, 1]} : vector<1x128xf32> to vector<1x32xf32>
    %148 = arith.addf %147, %63 : vector<1x32xf32>
    %149 = arith.mulf %144, %148 : vector<1x32xf32>
    %150 = arith.addf %146, %149 : vector<1x32xf32>
    %151 = math.tanh %150 : vector<1x32xf32>
    %cst_51 = arith.constant 1.000000e+00 : f32
    %152 = vector.broadcast %cst_51 : f32 to vector<1x32xf32>
    %153 = arith.subf %152, %145 : vector<1x32xf32>
    %154 = arith.mulf %153, %151 : vector<1x32xf32>
    %155 = arith.mulf %145, %133 : vector<1x32xf32>
    %156 = arith.addf %154, %155 : vector<1x32xf32>
    %cst_52 = arith.constant dense<0.000000e+00> : vector<1x128xf32>
    %157 = tpu.matmul %156, %62, %cst_52 {dimension_numbers = #tpu.dot_dimension_numbers<[1], [0], [0], [1], [0, 0, 1, 1], [], []>} : vector<1x32xf32>, vector<32x128xf32>, vector<1x128xf32> -> vector<1x128xf32>
    %158 = vector.extract_strided_slice %61 {offsets = [4, 0], sizes = [1, 128], strides = [1, 1]} : vector<8x128xf32> to vector<1x128xf32>
    %159 = vector.extract_strided_slice %158 {offsets = [0, 0], sizes = [1, 64], strides = [1, 1]} : vector<1x128xf32> to vector<1x64xf32>
    %160 = vector.extract_strided_slice %157 {offsets = [0, 0], sizes = [1, 64], strides = [1, 1]} : vector<1x128xf32> to vector<1x64xf32>
    %161 = arith.addf %159, %160 : vector<1x64xf32>
    %162 = arith.negf %161 : vector<1x64xf32>
    %163 = math.exp %162 : vector<1x64xf32>
    %cst_53 = arith.constant 1.000000e+00 : f32
    %164 = vector.broadcast %cst_53 : f32 to vector<1x64xf32>
    %165 = arith.addf %164, %163 : vector<1x64xf32>
    %166 = arith.divf %164, %165 : vector<1x64xf32>
    %167 = vector.extract_strided_slice %166 {offsets = [0, 0], sizes = [1, 32], strides = [1, 1]} : vector<1x64xf32> to vector<1x32xf32>
    %168 = vector.extract_strided_slice %166 {offsets = [0, 32], sizes = [1, 32], strides = [1, 1]} : vector<1x64xf32> to vector<1x32xf32>
    %169 = vector.extract_strided_slice %158 {offsets = [0, 64], sizes = [1, 32], strides = [1, 1]} : vector<1x128xf32> to vector<1x32xf32>
    %170 = vector.extract_strided_slice %157 {offsets = [0, 64], sizes = [1, 32], strides = [1, 1]} : vector<1x128xf32> to vector<1x32xf32>
    %171 = arith.addf %170, %63 : vector<1x32xf32>
    %172 = arith.mulf %167, %171 : vector<1x32xf32>
    %173 = arith.addf %169, %172 : vector<1x32xf32>
    %174 = math.tanh %173 : vector<1x32xf32>
    %cst_54 = arith.constant 1.000000e+00 : f32
    %175 = vector.broadcast %cst_54 : f32 to vector<1x32xf32>
    %176 = arith.subf %175, %168 : vector<1x32xf32>
    %177 = arith.mulf %176, %174 : vector<1x32xf32>
    %178 = arith.mulf %168, %156 : vector<1x32xf32>
    %179 = arith.addf %177, %178 : vector<1x32xf32>
    %cst_55 = arith.constant dense<0.000000e+00> : vector<1x128xf32>
    %180 = tpu.matmul %179, %62, %cst_55 {dimension_numbers = #tpu.dot_dimension_numbers<[1], [0], [0], [1], [0, 0, 1, 1], [], []>} : vector<1x32xf32>, vector<32x128xf32>, vector<1x128xf32> -> vector<1x128xf32>
    %181 = vector.extract_strided_slice %61 {offsets = [5, 0], sizes = [1, 128], strides = [1, 1]} : vector<8x128xf32> to vector<1x128xf32>
    %182 = vector.extract_strided_slice %181 {offsets = [0, 0], sizes = [1, 64], strides = [1, 1]} : vector<1x128xf32> to vector<1x64xf32>
    %183 = vector.extract_strided_slice %180 {offsets = [0, 0], sizes = [1, 64], strides = [1, 1]} : vector<1x128xf32> to vector<1x64xf32>
    %184 = arith.addf %182, %183 : vector<1x64xf32>
    %185 = arith.negf %184 : vector<1x64xf32>
    %186 = math.exp %185 : vector<1x64xf32>
    %cst_56 = arith.constant 1.000000e+00 : f32
    %187 = vector.broadcast %cst_56 : f32 to vector<1x64xf32>
    %188 = arith.addf %187, %186 : vector<1x64xf32>
    %189 = arith.divf %187, %188 : vector<1x64xf32>
    %190 = vector.extract_strided_slice %189 {offsets = [0, 0], sizes = [1, 32], strides = [1, 1]} : vector<1x64xf32> to vector<1x32xf32>
    %191 = vector.extract_strided_slice %189 {offsets = [0, 32], sizes = [1, 32], strides = [1, 1]} : vector<1x64xf32> to vector<1x32xf32>
    %192 = vector.extract_strided_slice %181 {offsets = [0, 64], sizes = [1, 32], strides = [1, 1]} : vector<1x128xf32> to vector<1x32xf32>
    %193 = vector.extract_strided_slice %180 {offsets = [0, 64], sizes = [1, 32], strides = [1, 1]} : vector<1x128xf32> to vector<1x32xf32>
    %194 = arith.addf %193, %63 : vector<1x32xf32>
    %195 = arith.mulf %190, %194 : vector<1x32xf32>
    %196 = arith.addf %192, %195 : vector<1x32xf32>
    %197 = math.tanh %196 : vector<1x32xf32>
    %cst_57 = arith.constant 1.000000e+00 : f32
    %198 = vector.broadcast %cst_57 : f32 to vector<1x32xf32>
    %199 = arith.subf %198, %191 : vector<1x32xf32>
    %200 = arith.mulf %199, %197 : vector<1x32xf32>
    %201 = arith.mulf %191, %179 : vector<1x32xf32>
    %202 = arith.addf %200, %201 : vector<1x32xf32>
    %cst_58 = arith.constant dense<0.000000e+00> : vector<1x128xf32>
    %203 = tpu.matmul %202, %62, %cst_58 {dimension_numbers = #tpu.dot_dimension_numbers<[1], [0], [0], [1], [0, 0, 1, 1], [], []>} : vector<1x32xf32>, vector<32x128xf32>, vector<1x128xf32> -> vector<1x128xf32>
    %204 = vector.extract_strided_slice %61 {offsets = [6, 0], sizes = [1, 128], strides = [1, 1]} : vector<8x128xf32> to vector<1x128xf32>
    %205 = vector.extract_strided_slice %204 {offsets = [0, 0], sizes = [1, 64], strides = [1, 1]} : vector<1x128xf32> to vector<1x64xf32>
    %206 = vector.extract_strided_slice %203 {offsets = [0, 0], sizes = [1, 64], strides = [1, 1]} : vector<1x128xf32> to vector<1x64xf32>
    %207 = arith.addf %205, %206 : vector<1x64xf32>
    %208 = arith.negf %207 : vector<1x64xf32>
    %209 = math.exp %208 : vector<1x64xf32>
    %cst_59 = arith.constant 1.000000e+00 : f32
    %210 = vector.broadcast %cst_59 : f32 to vector<1x64xf32>
    %211 = arith.addf %210, %209 : vector<1x64xf32>
    %212 = arith.divf %210, %211 : vector<1x64xf32>
    %213 = vector.extract_strided_slice %212 {offsets = [0, 0], sizes = [1, 32], strides = [1, 1]} : vector<1x64xf32> to vector<1x32xf32>
    %214 = vector.extract_strided_slice %212 {offsets = [0, 32], sizes = [1, 32], strides = [1, 1]} : vector<1x64xf32> to vector<1x32xf32>
    %215 = vector.extract_strided_slice %204 {offsets = [0, 64], sizes = [1, 32], strides = [1, 1]} : vector<1x128xf32> to vector<1x32xf32>
    %216 = vector.extract_strided_slice %203 {offsets = [0, 64], sizes = [1, 32], strides = [1, 1]} : vector<1x128xf32> to vector<1x32xf32>
    %217 = arith.addf %216, %63 : vector<1x32xf32>
    %218 = arith.mulf %213, %217 : vector<1x32xf32>
    %219 = arith.addf %215, %218 : vector<1x32xf32>
    %220 = math.tanh %219 : vector<1x32xf32>
    %cst_60 = arith.constant 1.000000e+00 : f32
    %221 = vector.broadcast %cst_60 : f32 to vector<1x32xf32>
    %222 = arith.subf %221, %214 : vector<1x32xf32>
    %223 = arith.mulf %222, %220 : vector<1x32xf32>
    %224 = arith.mulf %214, %202 : vector<1x32xf32>
    %225 = arith.addf %223, %224 : vector<1x32xf32>
    %cst_61 = arith.constant dense<0.000000e+00> : vector<1x128xf32>
    %226 = tpu.matmul %225, %62, %cst_61 {dimension_numbers = #tpu.dot_dimension_numbers<[1], [0], [0], [1], [0, 0, 1, 1], [], []>} : vector<1x32xf32>, vector<32x128xf32>, vector<1x128xf32> -> vector<1x128xf32>
    %227 = vector.extract_strided_slice %61 {offsets = [7, 0], sizes = [1, 128], strides = [1, 1]} : vector<8x128xf32> to vector<1x128xf32>
    %228 = vector.extract_strided_slice %227 {offsets = [0, 0], sizes = [1, 64], strides = [1, 1]} : vector<1x128xf32> to vector<1x64xf32>
    %229 = vector.extract_strided_slice %226 {offsets = [0, 0], sizes = [1, 64], strides = [1, 1]} : vector<1x128xf32> to vector<1x64xf32>
    %230 = arith.addf %228, %229 : vector<1x64xf32>
    %231 = arith.negf %230 : vector<1x64xf32>
    %232 = math.exp %231 : vector<1x64xf32>
    %cst_62 = arith.constant 1.000000e+00 : f32
    %233 = vector.broadcast %cst_62 : f32 to vector<1x64xf32>
    %234 = arith.addf %233, %232 : vector<1x64xf32>
    %235 = arith.divf %233, %234 : vector<1x64xf32>
    %236 = vector.extract_strided_slice %235 {offsets = [0, 0], sizes = [1, 32], strides = [1, 1]} : vector<1x64xf32> to vector<1x32xf32>
    %237 = vector.extract_strided_slice %235 {offsets = [0, 32], sizes = [1, 32], strides = [1, 1]} : vector<1x64xf32> to vector<1x32xf32>
    %238 = vector.extract_strided_slice %227 {offsets = [0, 64], sizes = [1, 32], strides = [1, 1]} : vector<1x128xf32> to vector<1x32xf32>
    %239 = vector.extract_strided_slice %226 {offsets = [0, 64], sizes = [1, 32], strides = [1, 1]} : vector<1x128xf32> to vector<1x32xf32>
    %240 = arith.addf %239, %63 : vector<1x32xf32>
    %241 = arith.mulf %236, %240 : vector<1x32xf32>
    %242 = arith.addf %238, %241 : vector<1x32xf32>
    %243 = math.tanh %242 : vector<1x32xf32>
    %cst_63 = arith.constant 1.000000e+00 : f32
    %244 = vector.broadcast %cst_63 : f32 to vector<1x32xf32>
    %245 = arith.subf %244, %237 : vector<1x32xf32>
    %246 = arith.mulf %245, %243 : vector<1x32xf32>
    %247 = arith.mulf %237, %225 : vector<1x32xf32>
    %248 = arith.addf %246, %247 : vector<1x32xf32>
    %c0_64 = arith.constant 0 : index
    %c0_65 = arith.constant 0 : index
    %249 = vector.load %arg10[%c0_64, %c0_65] : memref<1x32xf32, #tpu.memory_space<vmem>>, vector<1x32xf32>
    tpu.vector_store %arg10[%c0_64, %c0_65], %248 {strides = array<i32>} : memref<1x32xf32, #tpu.memory_space<vmem>>, vector<1x32xf32>,
    %250 = tpu.concatenate %87, %110, %133, %156, %179, %202, %225, %248 in 0 : vector<1x32xf32>, vector<1x32xf32>, vector<1x32xf32>, vector<1x32xf32>, vector<1x32xf32>, vector<1x32xf32>, vector<1x32xf32>, vector<1x32xf32> -> vector<8x32xf32>
    %c0_66 = arith.constant 0 : index
    %c0_67 = arith.constant 0 : index
    %251 = vector.load %arg7[%c0_66, %c0_67] : memref<32x128xf32, #tpu.memory_space<vmem>>, vector<32x128xf32>
    %cst_68 = arith.constant dense<0.000000e+00> : vector<8x128xf32>
    %252 = tpu.matmul %250, %251, %cst_68 {dimension_numbers = #tpu.dot_dimension_numbers<[1], [0], [0], [1], [0, 0, 1, 1], [], []>} : vector<8x32xf32>, vector<32x128xf32>, vector<8x128xf32> -> vector<8x128xf32>
    %c0_69 = arith.constant 0 : index
    %c0_70 = arith.constant 0 : index
    %253 = vector.load %arg8[%c0_69, %c0_70] : memref<1x128xf32, #tpu.memory_space<vmem>>, vector<1x128xf32>
    %254 = vector.broadcast %253 : vector<1x128xf32> to vector<8x128xf32>
    %255 = arith.addf %252, %254 : vector<8x128xf32>
    %cst_71 = arith.constant dense<0xFF800000> : vector<8xf32>
    %256 = vector.multi_reduction <maximumf>, %255, %cst_71 [1] : vector<8x128xf32> to vector<8xf32>
    %257 = vector.shape_cast %256 : vector<8xf32> to vector<8x1xf32>
    %258 = vector.broadcast %257 : vector<8x1xf32> to vector<8x128xf32>
    %259 = arith.subf %255, %258 : vector<8x128xf32>
    %260 = math.exp %259 : vector<8x128xf32>
    %cst_72 = arith.constant dense<0.000000e+00> : vector<8xf32>
    %261 = vector.multi_reduction <add>, %260, %cst_72 [1] : vector<8x128xf32> to vector<8xf32>
    %262 = vector.shape_cast %261 : vector<8xf32> to vector<8x1xf32>
    %263 = math.log %262 : vector<8x1xf32>
    %264 = vector.broadcast %263 : vector<8x1xf32> to vector<8x128xf32>
    %265 = arith.subf %259, %264 : vector<8x128xf32>
    %c0_73 = arith.constant 0 : index
    %c0_74 = arith.constant 0 : index
    %266 = vector.load %arg9[%c0_73, %c0_74] : memref<8x128xf32, #tpu.memory_space<vmem>>, vector<8x128xf32>
    tpu.vector_store %arg9[%c0_73, %c0_74], %265 {strides = array<i32>} : memref<8x128xf32, #tpu.memory_space<vmem>>, vector<8x128xf32>,
    return
  }
}

</mosaic_0001>

<llo_original>
// kernel: tpu_custom_call.1
$region0: #{tpu_custom_call.1}
  #allocation0 [shape = 'u32[]', space=smem, size = 0x4, offset = 0x4, fixed_abs, tag = 'smem constant byte address 0x4 - core index']
  #allocation1 [shape = 'u32[72,128]{1,0:T(1,128)}', space=vmem, size = 0x9000, scoped, tag = 'internal scratch']
  %s0 = inlined_call_operand.vmem [shape: s32[8], index: 0, kind: input, shape index: {}]
  %s1 = inlined_call_operand.vmem [shape: f32[128,32], index: 1, kind: input, shape index: {}]
  %s2 = inlined_call_operand.vmem [shape: f32[32,128], index: 2, kind: input, shape index: {}]
  %s3 = inlined_call_operand.vmem [shape: f32[32,128], index: 3, kind: input, shape index: {}]
  %s4 = inlined_call_operand.vmem [shape: f32[1,128], index: 4, kind: input, shape index: {}]
  %s5 = inlined_call_operand.vmem [shape: f32[1,32], index: 5, kind: input, shape index: {}]
  %s6 = inlined_call_operand.vmem [shape: f32[1,32], index: 6, kind: input, shape index: {}]
  %s7 = inlined_call_operand.vmem [shape: f32[32,128], index: 7, kind: input, shape index: {}]
  %s8 = inlined_call_operand.vmem [shape: f32[1,128], index: 8, kind: input, shape index: {}]
  %s9 = inlined_call_operand.hbm [shape: f32[8,128], index: 9, kind: output, shape index: {0}]
  %s10 = inlined_call_operand.hbm [shape: f32[1,32], index: 10, kind: output, shape index: {1}]
  %11 = xla_tuple %s9, %s10
  %s12 = sld [smem:[#allocation0]]
  $region58: #{tpu_custom_call.1} parent=0
    _
  %s14 = ssub.s32 1, %s12
  %s15 = scalar_select 0, %s14, %s12
  $region1: #{tpu_custom_call.1} parent=0
    #allocation2 [shape = 'u8[512]{0}', space=smem, size = 0x200, scoped, tag = 'input window, operand 0, single buffered']
    #allocation3 [shape = 's32[1]{0}', space=sflag, size = 0x4, scoped, tag = 'scoped memory for tpu_custom_call.1']
    #allocation4 [shape = 's32[1]{0}', space=sflag, size = 0x4, scoped, tag = 'scoped memory for tpu_custom_call.1']
    #allocation5 [shape = 'u8[4096]{0}', space=vmem, size = 0x1000, scoped, tag = 'output window, operand 0, single buffered']
    #allocation6 [shape = 'u8[512]{0}', space=vmem, size = 0x400, scoped, tag = 'output window, operand 1, single buffered']
    #allocation7 [shape = 's32[1]{0}', space=sflag, size = 0x4, scoped, tag = 'scoped memory for tpu_custom_call.1']
    %16 = vsyncpa [#allocation4], 0
    %17 = vsyncpa [#allocation3], 0
    %18 = vsyncpa [#allocation7], 0
    // Predicated region
    $region2: #{tpu_custom_call.1} parent=1 // pred_check
      _
    $region3: #{tpu_custom_call.1} parent=1 // pred_check_branch
      %20 = sbr.rel (0) target = $region5
    $region4: #{tpu_custom_call.1} parent=1 // pred_region
      %22 = vsyncadd [#allocation4], 0
      %s24 = sshll.u32 %s0, 4
      %s25 = int_to_ptr.vmem [resolvable:$true] %s24
      %27 = dma.vmem_to_smem %s25, 16, [#allocation2], [#allocation4]
    $region5: #{tpu_custom_call.1} parent=1 // pred_fallthru
      _
    // Predicated region
    $region6: #{tpu_custom_call.1} parent=1 // pred_check
      _
    $region7: #{tpu_custom_call.1} parent=1 // pred_check_branch
      %29 = sbr.rel (0) target = $region9
    $region8: #{tpu_custom_call.1} parent=1 // pred_region
      _
    $region9: #{tpu_custom_call.1} parent=1 // pred_fallthru
      _
    // Predicated region
    $region10: #{tpu_custom_call.1} parent=1 // pred_check
      _
    $region11: #{tpu_custom_call.1} parent=1 // pred_check_branch
      %31 = sbr.rel (0) target = $region13
    $region12: #{tpu_custom_call.1} parent=1 // pred_region
      _
    $region13: #{tpu_custom_call.1} parent=1 // pred_fallthru
      _
    // Predicated region
    $region14: #{tpu_custom_call.1} parent=1 // pred_check
      _
    $region15: #{tpu_custom_call.1} parent=1 // pred_check_branch
      %33 = sbr.rel (0) target = $region17
    $region16: #{tpu_custom_call.1} parent=1 // pred_region
      _
    $region17: #{tpu_custom_call.1} parent=1 // pred_fallthru
      _
    // Predicated region
    $region18: #{tpu_custom_call.1} parent=1 // pred_check
      _
    $region19: #{tpu_custom_call.1} parent=1 // pred_check_branch
      %35 = sbr.rel (0) target = $region21
    $region20: #{tpu_custom_call.1} parent=1 // pred_region
      _
    $region21: #{tpu_custom_call.1} parent=1 // pred_fallthru
      _
    // Predicated region
    $region22: #{tpu_custom_call.1} parent=1 // pred_check
      _
    $region23: #{tpu_custom_call.1} parent=1 // pred_check_branch
      %37 = sbr.rel (0) target = $region25
    $region24: #{tpu_custom_call.1} parent=1 // pred_region
      _
    $region25: #{tpu_custom_call.1} parent=1 // pred_fallthru
      _
    // Predicated region
    $region26: #{tpu_custom_call.1} parent=1 // pred_check
      _
    $region27: #{tpu_custom_call.1} parent=1 // pred_check_branch
      %39 = sbr.rel (0) target = $region29
    $region28: #{tpu_custom_call.1} parent=1 // pred_region
      _
    $region29: #{tpu_custom_call.1} parent=1 // pred_fallthru
      _
    // Predicated region
    $region30: #{tpu_custom_call.1} parent=1 // pred_check
      _
    $region31: #{tpu_custom_call.1} parent=1 // pred_check_branch
      %41 = sbr.rel (0) target = $region33
    $region32: #{tpu_custom_call.1} parent=1 // pred_region
      _
    $region33: #{tpu_custom_call.1} parent=1 // pred_fallthru
      _
    // Predicated region
    $region34: #{tpu_custom_call.1} parent=1 // pred_check
      _
    $region35: #{tpu_custom_call.1} parent=1 // pred_check_branch
      %43 = sbr.rel (0) target = $region37
    $region36: #{tpu_custom_call.1} parent=1 // pred_region
      _
    $region37: #{tpu_custom_call.1} parent=1 // pred_fallthru
      _
    // Predicated region
    $region38: #{tpu_custom_call.1} parent=1 // pred_check
      _
    $region39: #{tpu_custom_call.1} parent=1 // pred_check_branch
      %45 = sbr.rel (0) target = $region41
    $region40: #{tpu_custom_call.1} parent=1 // pred_region
      %47 = dma.done [#allocation4], 16
    $region41: #{tpu_custom_call.1} parent=1 // pred_fallthru
      _
    %48 = sfence
    %s49 = sld [smem:[#allocation2]]
    %p50 = scmp.gt.s32.totalorder %s49, 0
    %s51 = scalar_select %p50, %s49, 0
    %p52 = scmp.lt.s32.totalorder %s51, 127
    %s53 = scalar_select %p52, %s51, 127
    %s54 = scalar_lea.vmem %s1, %s53
    %v55 = vld [vmem:[%s54] sm:$0x1]
    %v56 = vmax.f32 %v55, 0.0
    %s57 = sld [smem:[#allocation2 + $0x1]]
    %p58 = scmp.gt.s32.totalorder %s57, 0
    %s59 = scalar_select %p58, %s57, 0
    %p60 = scmp.lt.s32.totalorder %s59, 127
    %s61 = scalar_select %p60, %s59, 127
    %s62 = scalar_lea.vmem %s1, %s61
    %v63 = vld [vmem:[%s62] sm:$0x1]
    %v64 = vmax.f32 %v63, 0.0
    %s65 = sld [smem:[#allocation2 + $0x2]]
    %p66 = scmp.gt.s32.totalorder %s65, 0
    %s67 = scalar_select %p66, %s65, 0
    %p68 = scmp.lt.s32.totalorder %s67, 127
    %s69 = scalar_select %p68, %s67, 127
    %s70 = scalar_lea.vmem %s1, %s69
    %v71 = vld [vmem:[%s70] sm:$0x1]
    %v72 = vmax.f32 %v71, 0.0
    %s73 = sld [smem:[#allocation2 + $0x3]]
    %p74 = scmp.gt.s32.totalorder %s73, 0
    %s75 = scalar_select %p74, %s73, 0
    %p76 = scmp.lt.s32.totalorder %s75, 127
    %s77 = scalar_select %p76, %s75, 127
    %s78 = scalar_lea.vmem %s1, %s77
    %v79 = vld [vmem:[%s78] sm:$0x1]
    %v80 = vmax.f32 %v79, 0.0
    %s81 = sld [smem:[#allocation2 + $0x4]]
    %p82 = scmp.gt.s32.totalorder %s81, 0
    %s83 = scalar_select %p82, %s81, 0
    %p84 = scmp.lt.s32.totalorder %s83, 127
    %s85 = scalar_select %p84, %s83, 127
    %s86 = scalar_lea.vmem %s1, %s85
    %v87 = vld [vmem:[%s86] sm:$0x1]
    %v88 = vmax.f32 %v87, 0.0
    %s89 = sld [smem:[#allocation2 + $0x5]]
    %p90 = scmp.gt.s32.totalorder %s89, 0
    %s91 = scalar_select %p90, %s89, 0
    %p92 = scmp.lt.s32.totalorder %s91, 127
    %s93 = scalar_select %p92, %s91, 127
    %s94 = scalar_lea.vmem %s1, %s93
    %v95 = vld [vmem:[%s94] sm:$0x1]
    %v96 = vmax.f32 %v95, 0.0
    %s97 = sld [smem:[#allocation2 + $0x6]]
    %p98 = scmp.gt.s32.totalorder %s97, 0
    %s99 = scalar_select %p98, %s97, 0
    %p100 = scmp.lt.s32.totalorder %s99, 127
    %s101 = scalar_select %p100, %s99, 127
    %s102 = scalar_lea.vmem %s1, %s101
    %v103 = vld [vmem:[%s102] sm:$0x1]
    %v104 = vmax.f32 %v103, 0.0
    %s105 = sld [smem:[#allocation2 + $0x7]]
    %p106 = scmp.gt.s32.totalorder %s105, 0
    %s107 = scalar_select %p106, %s105, 0
    %p108 = scmp.lt.s32.totalorder %s107, 127
    %s109 = scalar_select %p108, %s107, 127
    %s110 = scalar_lea.vmem %s1, %s109
    %v111 = vld [vmem:[%s110] sm:$0x1]
    %v112 = vmax.f32 %v111, 0.0
    %v114 = vrot.slane %v64, 7
    %v117 = vrot.slane %v72, 6
    %v120 = vrot.slane %v80, 5
    %v123 = vrot.slane %v88, 4
    %v126 = vrot.slane %v96, 3
    %v129 = vrot.slane %v104, 2
    %v132 = vrot.slane %v112, 1
    %vm134 = vcmask 1040384
    %v135 = vsel %vm134, %v56, %v114
    %vm136 = vcmask 1041408
    %v137 = vsel %vm136, %v135, %v117
    %vm138 = vcmask 1042432
    %v139 = vsel %vm138, %v137, %v120
    %vm140 = vcmask 1043456
    %v141 = vsel %vm140, %v139, %v123
    %vm142 = vcmask 1044480
    %v143 = vsel %vm142, %v141, %v126
    %vm144 = vcmask 1045504
    %v145 = vsel %vm144, %v143, %v129
    %vm146 = vcmask 1046528
    %v147 = vsel %vm146, %v145, %v132
    %v148 = vld [vmem:[%s2] sm:$0xff]
    %v149 = vld [vmem:[%s2 + $0x8] sm:$0xff]
    %v150 = vld [vmem:[%s2 + $0x10] sm:$0xff]
    %v151 = vld [vmem:[%s2 + $0x18] sm:$0xff]
    %v152 = vld [vmem:[%s4] sm:$0x1]
    %v154 = vperm.slane %v152, 0
    %vm156 = vcmask 261120
    %v158 = vsel %vm156, %v147, 0
    %160 = vmatpush.msra.mxu0 0.0
    %161 = vmatpush.msra.mxu0 0.0
    %162 = vmatpush.msra.mxu0 0.0
    %163 = vmatpush.msra.mxu0 0.0
    %164 = vmatpush.msra.mxu0 0.0
    %165 = vmatpush.msra.mxu0 0.0
    %166 = vmatpush.msra.mxu0 0.0
    %167 = vmatpush.msra.mxu0 0.0
    %168 = vmatpush.msra.mxu0 0.0
    %169 = vmatpush.msra.mxu0 0.0
    %170 = vmatpush.msra.mxu0 0.0
    %171 = vmatpush.msra.mxu0 0.0
    %172 = vmatpush.msra.mxu0 %v151
    %173 = vmatpush.msra.mxu0 %v150
    %174 = vmatpush.msra.mxu0 %v149
    %175 = vmatpush.msra.mxu0 %v148
    %176 = vmatmul.f32.gmra.mxu0 %v158
    %v177 = vpop.f32.mrf.mxu0
    %v178 = vadd.f32 %v154, %v177
    %179 = vdwg.mxu0
    %v180 = vld [vmem:[%s3] sm:$0xff]
    %v181 = vld [vmem:[%s3 + $0x8] sm:$0xff]
    %v182 = vld [vmem:[%s3 + $0x10] sm:$0xff]
    %v183 = vld [vmem:[%s3 + $0x18] sm:$0xff]
    %v184 = vld [vmem:[%s5] sm:$0x1]
    %v185 = vld [vmem:[%s6] sm:$0x1]
    %v187 = vsel %vm156, %v185, 0
    %189 = vmatpush.msra.mxu0 0.0
    %190 = vmatpush.msra.mxu0 0.0
    %191 = vmatpush.msra.mxu0 0.0
    %192 = vmatpush.msra.mxu0 0.0
    %193 = vmatpush.msra.mxu0 0.0
    %194 = vmatpush.msra.mxu0 0.0
    %195 = vmatpush.msra.mxu0 0.0
    %196 = vmatpush.msra.mxu0 0.0
    %197 = vmatpush.msra.mxu0 0.0
    %198 = vmatpush.msra.mxu0 0.0
    %199 = vmatpush.msra.mxu0 0.0
    %200 = vmatpush.msra.mxu0 0.0
    %201 = vmatpush.msra.mxu0 %v183
    %202 = vmatpush.msra.mxu0 %v182
    %203 = vmatpush.msra.mxu0 %v181
    %204 = vmatpush.msra.mxu0 %v180
    %205 = vmatmul.f32.gmra.mxu0 %v187
    %v206 = vpop.f32.mrf.mxu0
    %v207 = vadd.f32 0.0, %v206
    %208 = vdwg.mxu0
    %v209 = vadd.f32 %v178, %v207
    %v210 = vxor.u32 %v209, 2147483648
    %v211 = vmul.f32 %v210, 1.442695
    %v212 = vpow.pop %v211
    %v213 = vadd.f32 %v212, 1.0
    %v214 = vrcp.pop %v213
    %v215 = vmul.f32 %v213, %v214
    %v216 = vsub.f32 1.0, %v215
    %v217 = vmul.f32 %v214, %v216
    %v218 = vadd.f32 %v214, %v217
    %vm219 = vweird.f32 %v213
    %vm220 = vweird.f32 %v214
    %vm221 = vmor %vm219, %vm220
    %v222 = vsel %vm221, %v214, %v218
    %v223 = vand.u32 2147483647, %v213
    %vm224 = vcmp.eq.f32.partialorder %v223, 8.507059e+37
    %v225 = vand.u32 %v213, 2147483648
    %v226 = vor.u32 1.1754944e-38, %v225
    %v227 = vsel %vm224, %v226, %v222
    %v228 = vmul.f32 1.0, %v227
    %v230 = vperm.slane %v184, 0
    %231 = vrot.lane.b32.xlu0 %v230, 64
    %v232 = vpop.permute.xlu0 %231
    %v234 = vadd.f32 %v207, %v232
    %236 = vrot.lane.b32.xlu0 %v234, 64
    %v237 = vpop.permute.xlu0 %236
    %v239 = vmul.f32 %v228, %v237
    %241 = vrot.lane.b32.xlu0 %v239, 64
    %v242 = vpop.permute.xlu0 %241
    %v244 = vadd.f32 %v178, %v242
    %v245 = vtanh.pop %v244
    %v246 = vsub.f32 1.0, %v228
    %248 = vrot.lane.b32.xlu0 %v245, 96
    %v249 = vpop.permute.xlu0 %248
    %v251 = vmul.f32 %v246, %v249
    %v252 = vperm.slane %v185, 0
    %253 = vrot.lane.b32.xlu0 %v252, 32
    %v254 = vpop.permute.xlu0 %253
    %v256 = vmul.f32 %v228, %v254
    %v257 = vadd.f32 %v251, %v256
    %259 = vrot.lane.b32.xlu0 %v257, 96
    %v260 = vpop.permute.xlu0 %259
    %v261 = vsel %vm156, %v260, 0
    %263 = vmatpush.msra.mxu0 0.0
    %264 = vmatpush.msra.mxu0 0.0
    %265 = vmatpush.msra.mxu0 0.0
    %266 = vmatpush.msra.mxu0 0.0
    %267 = vmatpush.msra.mxu0 0.0
    %268 = vmatpush.msra.mxu0 0.0
    %269 = vmatpush.msra.mxu0 0.0
    %270 = vmatpush.msra.mxu0 0.0
    %271 = vmatpush.msra.mxu0 0.0
    %272 = vmatpush.msra.mxu0 0.0
    %273 = vmatpush.msra.mxu0 0.0
    %274 = vmatpush.msra.mxu0 0.0
    %275 = vmatpush.msra.mxu0 %v183
    %276 = vmatpush.msra.mxu0 %v182
    %277 = vmatpush.msra.mxu0 %v181
    %278 = vmatpush.msra.mxu0 %v180
    %279 = vmatmul.f32.gmra.mxu0 %v261
    %v280 = vpop.f32.mrf.mxu0
    %v281 = vadd.f32 0.0, %v280
    %282 = vdwg.mxu0
    %v284 = vrot.slane %v281, 7
    %v286 = vadd.f32 %v178, %v284
    %v287 = vxor.u32 %v286, 2147483648
    %v288 = vmul.f32 %v287, 1.442695
    %v289 = vpow.pop %v288
    %v290 = vadd.f32 %v289, 1.0
    %v291 = vrcp.pop %v290
    %v292 = vmul.f32 %v290, %v291
    %v293 = vsub.f32 1.0, %v292
    %v294 = vmul.f32 %v291, %v293
    %v295 = vadd.f32 %v291, %v294
    %vm296 = vweird.f32 %v290
    %vm297 = vweird.f32 %v291
    %vm298 = vmor %vm296, %vm297
    %v299 = vsel %vm298, %v291, %v295
    %v300 = vand.u32 2147483647, %v290
    %vm301 = vcmp.eq.f32.partialorder %v300, 8.507059e+37
    %v302 = vand.u32 %v290, 2147483648
    %v303 = vor.u32 1.1754944e-38, %v302
    %v304 = vsel %vm301, %v303, %v299
    %v305 = vmul.f32 1.0, %v304
    %v306 = vadd.f32 %v281, %v232
    %v308 = vrot.slane %v306, 7
    %309 = vrot.lane.b32.xlu0 %v308, 64
    %v310 = vpop.permute.xlu0 %309
    %v312 = vmul.f32 %v305, %v310
    %314 = vrot.lane.b32.xlu0 %v312, 64
    %v315 = vpop.permute.xlu0 %314
    %v317 = vadd.f32 %v178, %v315
    %v318 = vtanh.pop %v317
    %v319 = vsub.f32 1.0, %v305
    %321 = vrot.lane.b32.xlu0 %v318, 96
    %v322 = vpop.permute.xlu0 %321
    %v324 = vmul.f32 %v319, %v322
    %v325 = vrot.slane %v257, 7
    %v327 = vmul.f32 %v305, %v325
    %v328 = vadd.f32 %v324, %v327
    %v330 = vrot.slane %v328, 1
    %331 = vrot.lane.b32.xlu0 %v330, 96
    %v332 = vpop.permute.xlu0 %331
    %v333 = vsel %vm156, %v332, 0
    %335 = vmatpush.msra.mxu0 0.0
    %336 = vmatpush.msra.mxu0 0.0
    %337 = vmatpush.msra.mxu0 0.0
    %338 = vmatpush.msra.mxu0 0.0
    %339 = vmatpush.msra.mxu0 0.0
    %340 = vmatpush.msra.mxu0 0.0
    %341 = vmatpush.msra.mxu0 0.0
    %342 = vmatpush.msra.mxu0 0.0
    %343 = vmatpush.msra.mxu0 0.0
    %344 = vmatpush.msra.mxu0 0.0
    %345 = vmatpush.msra.mxu0 0.0
    %346 = vmatpush.msra.mxu0 0.0
    %347 = vmatpush.msra.mxu0 %v183
    %348 = vmatpush.msra.mxu0 %v182
    %349 = vmatpush.msra.mxu0 %v181
    %350 = vmatpush.msra.mxu0 %v180
    %351 = vmatmul.f32.gmra.mxu0 %v333
    %v352 = vpop.f32.mrf.mxu0
    %v353 = vadd.f32 0.0, %v352
    %354 = vdwg.mxu0
    %v356 = vrot.slane %v353, 6
    %v358 = vadd.f32 %v178, %v356
    %v359 = vxor.u32 %v358, 2147483648
    %v360 = vmul.f32 %v359, 1.442695
    %v361 = vpow.pop %v360
    %v362 = vadd.f32 %v361, 1.0
    %v363 = vrcp.pop %v362
    %v364 = vmul.f32 %v362, %v363
    %v365 = vsub.f32 1.0, %v364
    %v366 = vmul.f32 %v363, %v365
    %v367 = vadd.f32 %v363, %v366
    %vm368 = vweird.f32 %v362
    %vm369 = vweird.f32 %v363
    %vm370 = vmor %vm368, %vm369
    %v371 = vsel %vm370, %v363, %v367
    %v372 = vand.u32 2147483647, %v362
    %vm373 = vcmp.eq.f32.partialorder %v372, 8.507059e+37
    %v374 = vand.u32 %v362, 2147483648
    %v375 = vor.u32 1.1754944e-38, %v374
    %v376 = vsel %vm373, %v375, %v371
    %v377 = vmul.f32 1.0, %v376
    %v378 = vadd.f32 %v353, %v232
    %v380 = vrot.slane %v378, 6
    %381 = vrot.lane.b32.xlu0 %v380, 64
    %v382 = vpop.permute.xlu0 %381
    %v384 = vmul.f32 %v377, %v382
    %386 = vrot.lane.b32.xlu0 %v384, 64
    %v387 = vpop.permute.xlu0 %386
    %v389 = vadd.f32 %v178, %v387
    %v390 = vtanh.pop %v389
    %v391 = vsub.f32 1.0, %v377
    %393 = vrot.lane.b32.xlu0 %v390, 96
    %v394 = vpop.permute.xlu0 %393
    %v396 = vmul.f32 %v391, %v394
    %v397 = vrot.slane %v328, 7
    %v399 = vmul.f32 %v377, %v397
    %v400 = vadd.f32 %v396, %v399
    %v402 = vrot.slane %v400, 2
    %403 = vrot.lane.b32.xlu0 %v402, 96
    %v404 = vpop.permute.xlu0 %403
    %v405 = vsel %vm156, %v404, 0
    %407 = vmatpush.msra.mxu0 0.0
    %408 = vmatpush.msra.mxu0 0.0
    %409 = vmatpush.msra.mxu0 0.0
    %410 = vmatpush.msra.mxu0 0.0
    %411 = vmatpush.msra.mxu0 0.0
    %412 = vmatpush.msra.mxu0 0.0
    %413 = vmatpush.msra.mxu0 0.0
    %414 = vmatpush.msra.mxu0 0.0
    %415 = vmatpush.msra.mxu0 0.0
    %416 = vmatpush.msra.mxu0 0.0
    %417 = vmatpush.msra.mxu0 0.0
    %418 = vmatpush.msra.mxu0 0.0
    %419 = vmatpush.msra.mxu0 %v183
    %420 = vmatpush.msra.mxu0 %v182
    %421 = vmatpush.msra.mxu0 %v181
    %422 = vmatpush.msra.mxu0 %v180
    %423 = vmatmul.f32.gmra.mxu0 %v405
    %v424 = vpop.f32.mrf.mxu0
    %v425 = vadd.f32 0.0, %v424
    %426 = vdwg.mxu0
    %v428 = vrot.slane %v425, 5
    %v430 = vadd.f32 %v178, %v428
    %v431 = vxor.u32 %v430, 2147483648
    %v432 = vmul.f32 %v431, 1.442695
    %v433 = vpow.pop %v432
    %v434 = vadd.f32 %v433, 1.0
    %v435 = vrcp.pop %v434
    %v436 = vmul.f32 %v434, %v435
    %v437 = vsub.f32 1.0, %v436
    %v438 = vmul.f32 %v435, %v437
    %v439 = vadd.f32 %v435, %v438
    %vm440 = vweird.f32 %v434
    %vm441 = vweird.f32 %v435
    %vm442 = vmor %vm440, %vm441
    %v443 = vsel %vm442, %v435, %v439
    %v444 = vand.u32 2147483647, %v434
    %vm445 = vcmp.eq.f32.partialorder %v444, 8.507059e+37
    %v446 = vand.u32 %v434, 2147483648
    %v447 = vor.u32 1.1754944e-38, %v446
    %v448 = vsel %vm445, %v447, %v443
    %v449 = vmul.f32 1.0, %v448
    %v450 = vadd.f32 %v425, %v232
    %v452 = vrot.slane %v450, 5
    %453 = vrot.lane.b32.xlu0 %v452, 64
    %v454 = vpop.permute.xlu0 %453
    %v456 = vmul.f32 %v449, %v454
    %458 = vrot.lane.b32.xlu0 %v456, 64
    %v459 = vpop.permute.xlu0 %458
    %v461 = vadd.f32 %v178, %v459
    %v462 = vtanh.pop %v461
    %v463 = vsub.f32 1.0, %v449
    %465 = vrot.lane.b32.xlu0 %v462, 96
    %v466 = vpop.permute.xlu0 %465
    %v468 = vmul.f32 %v463, %v466
    %v469 = vrot.slane %v400, 7
    %v471 = vmul.f32 %v449, %v469
    %v472 = vadd.f32 %v468, %v471
    %v474 = vrot.slane %v472, 3
    %475 = vrot.lane.b32.xlu0 %v474, 96
    %v476 = vpop.permute.xlu0 %475
    %v477 = vsel %vm156, %v476, 0
    %479 = vmatpush.msra.mxu0 0.0
    %480 = vmatpush.msra.mxu0 0.0
    %481 = vmatpush.msra.mxu0 0.0
    %482 = vmatpush.msra.mxu0 0.0
    %483 = vmatpush.msra.mxu0 0.0
    %484 = vmatpush.msra.mxu0 0.0
    %485 = vmatpush.msra.mxu0 0.0
    %486 = vmatpush.msra.mxu0 0.0
    %487 = vmatpush.msra.mxu0 0.0
    %488 = vmatpush.msra.mxu0 0.0
    %489 = vmatpush.msra.mxu0 0.0
    %490 = vmatpush.msra.mxu0 0.0
    %491 = vmatpush.msra.mxu0 %v183
    %492 = vmatpush.msra.mxu0 %v182
    %493 = vmatpush.msra.mxu0 %v181
    %494 = vmatpush.msra.mxu0 %v180
    %495 = vmatmul.f32.gmra.mxu0 %v477
    %v496 = vpop.f32.mrf.mxu0
    %v497 = vadd.f32 0.0, %v496
    %498 = vdwg.mxu0
    %v500 = vrot.slane %v497, 4
    %v502 = vadd.f32 %v178, %v500
    %v503 = vxor.u32 %v502, 2147483648
    %v504 = vmul.f32 %v503, 1.442695
    %v505 = vpow.pop %v504
    %v506 = vadd.f32 %v505, 1.0
    %v507 = vrcp.pop %v506
    %v508 = vmul.f32 %v506, %v507
    %v509 = vsub.f32 1.0, %v508
    %v510 = vmul.f32 %v507, %v509
    %v511 = vadd.f32 %v507, %v510
    %vm512 = vweird.f32 %v506
    %vm513 = vweird.f32 %v507
    %vm514 = vmor %vm512, %vm513
    %v515 = vsel %vm514, %v507, %v511
    %v516 = vand.u32 2147483647, %v506
    %vm517 = vcmp.eq.f32.partialorder %v516, 8.507059e+37
    %v518 = vand.u32 %v506, 2147483648
    %v519 = vor.u32 1.1754944e-38, %v518
    %v520 = vsel %vm517, %v519, %v515
    %v521 = vmul.f32 1.0, %v520
    %v522 = vadd.f32 %v497, %v232
    %v524 = vrot.slane %v522, 4
    %525 = vrot.lane.b32.xlu0 %v524, 64
    %v526 = vpop.permute.xlu0 %525
    %v528 = vmul.f32 %v521, %v526
    %530 = vrot.lane.b32.xlu0 %v528, 64
    %v531 = vpop.permute.xlu0 %530
    %v533 = vadd.f32 %v178, %v531
    %v534 = vtanh.pop %v533
    %v535 = vsub.f32 1.0, %v521
    %537 = vrot.lane.b32.xlu0 %v534, 96
    %v538 = vpop.permute.xlu0 %537
    %v540 = vmul.f32 %v535, %v538
    %v541 = vrot.slane %v472, 7
    %v543 = vmul.f32 %v521, %v541
    %v544 = vadd.f32 %v540, %v543
    %v546 = vrot.slane %v544, 4
    %547 = vrot.lane.b32.xlu0 %v546, 96
    %v548 = vpop.permute.xlu0 %547
    %v549 = vsel %vm156, %v548, 0
    %551 = vmatpush.msra.mxu0 0.0
    %552 = vmatpush.msra.mxu0 0.0
    %553 = vmatpush.msra.mxu0 0.0
    %554 = vmatpush.msra.mxu0 0.0
    %555 = vmatpush.msra.mxu0 0.0
    %556 = vmatpush.msra.mxu0 0.0
    %557 = vmatpush.msra.mxu0 0.0
    %558 = vmatpush.msra.mxu0 0.0
    %559 = vmatpush.msra.mxu0 0.0
    %560 = vmatpush.msra.mxu0 0.0
    %561 = vmatpush.msra.mxu0 0.0
    %562 = vmatpush.msra.mxu0 0.0
    %563 = vmatpush.msra.mxu0 %v183
    %564 = vmatpush.msra.mxu0 %v182
    %565 = vmatpush.msra.mxu0 %v181
    %566 = vmatpush.msra.mxu0 %v180
    %567 = vmatmul.f32.gmra.mxu0 %v549
    %v568 = vpop.f32.mrf.mxu0
    %v569 = vadd.f32 0.0, %v568
    %570 = vdwg.mxu0
    %v572 = vrot.slane %v569, 3
    %v574 = vadd.f32 %v178, %v572
    %v575 = vxor.u32 %v574, 2147483648
    %v576 = vmul.f32 %v575, 1.442695
    %v577 = vpow.pop %v576
    %v578 = vadd.f32 %v577, 1.0
    %v579 = vrcp.pop %v578
    %v580 = vmul.f32 %v578, %v579
    %v581 = vsub.f32 1.0, %v580
    %v582 = vmul.f32 %v579, %v581
    %v583 = vadd.f32 %v579, %v582
    %vm584 = vweird.f32 %v578
    %vm585 = vweird.f32 %v579
    %vm586 = vmor %vm584, %vm585
    %v587 = vsel %vm586, %v579, %v583
    %v588 = vand.u32 2147483647, %v578
    %vm589 = vcmp.eq.f32.partialorder %v588, 8.507059e+37
    %v590 = vand.u32 %v578, 2147483648
    %v591 = vor.u32 1.1754944e-38, %v590
    %v592 = vsel %vm589, %v591, %v587
    %v593 = vmul.f32 1.0, %v592
    %v594 = vadd.f32 %v569, %v232
    %v596 = vrot.slane %v594, 3
    %597 = vrot.lane.b32.xlu0 %v596, 64
    %v598 = vpop.permute.xlu0 %597
    %v600 = vmul.f32 %v593, %v598
    %602 = vrot.lane.b32.xlu0 %v600, 64
    %v603 = vpop.permute.xlu0 %602
    %v605 = vadd.f32 %v178, %v603
    %v606 = vtanh.pop %v605
    %v607 = vsub.f32 1.0, %v593
    %609 = vrot.lane.b32.xlu0 %v606, 96
    %v610 = vpop.permute.xlu0 %609
    %v612 = vmul.f32 %v607, %v610
    %v613 = vrot.slane %v544, 7
    %v615 = vmul.f32 %v593, %v613
    %v616 = vadd.f32 %v612, %v615
    %v618 = vrot.slane %v616, 5
    %619 = vrot.lane.b32.xlu0 %v618, 96
    %v620 = vpop.permute.xlu0 %619
    %v621 = vsel %vm156, %v620, 0
    %623 = vmatpush.msra.mxu0 0.0
    %624 = vmatpush.msra.mxu0 0.0
    %625 = vmatpush.msra.mxu0 0.0
    %626 = vmatpush.msra.mxu0 0.0
    %627 = vmatpush.msra.mxu0 0.0
    %628 = vmatpush.msra.mxu0 0.0
    %629 = vmatpush.msra.mxu0 0.0
    %630 = vmatpush.msra.mxu0 0.0
    %631 = vmatpush.msra.mxu0 0.0
    %632 = vmatpush.msra.mxu0 0.0
    %633 = vmatpush.msra.mxu0 0.0
    %634 = vmatpush.msra.mxu0 0.0
    %635 = vmatpush.msra.mxu0 %v183
    %636 = vmatpush.msra.mxu0 %v182
    %637 = vmatpush.msra.mxu0 %v181
    %638 = vmatpush.msra.mxu0 %v180
    %639 = vmatmul.f32.gmra.mxu0 %v621
    %v640 = vpop.f32.mrf.mxu0
    %v641 = vadd.f32 0.0, %v640
    %642 = vdwg.mxu0
    %v644 = vrot.slane %v641, 2
    %v646 = vadd.f32 %v178, %v644
    %v647 = vxor.u32 %v646, 2147483648
    %v648 = vmul.f32 %v647, 1.442695
    %v649 = vpow.pop %v648
    %v650 = vadd.f32 %v649, 1.0
    %v651 = vrcp.pop %v650
    %v652 = vmul.f32 %v650, %v651
    %v653 = vsub.f32 1.0, %v652
    %v654 = vmul.f32 %v651, %v653
    %v655 = vadd.f32 %v651, %v654
    %vm656 = vweird.f32 %v650
    %vm657 = vweird.f32 %v651
    %vm658 = vmor %vm656, %vm657
    %v659 = vsel %vm658, %v651, %v655
    %v660 = vand.u32 2147483647, %v650
    %vm661 = vcmp.eq.f32.partialorder %v660, 8.507059e+37
    %v662 = vand.u32 %v650, 2147483648
    %v663 = vor.u32 1.1754944e-38, %v662
    %v664 = vsel %vm661, %v663, %v659
    %v665 = vmul.f32 1.0, %v664
    %v666 = vadd.f32 %v641, %v232
    %v668 = vrot.slane %v666, 2
    %669 = vrot.lane.b32.xlu0 %v668, 64
    %v670 = vpop.permute.xlu0 %669
    %v672 = vmul.f32 %v665, %v670
    %674 = vrot.lane.b32.xlu0 %v672, 64
    %v675 = vpop.permute.xlu0 %674
    %v677 = vadd.f32 %v178, %v675
    %v678 = vtanh.pop %v677
    %v679 = vsub.f32 1.0, %v665
    %681 = vrot.lane.b32.xlu0 %v678, 96
    %v682 = vpop.permute.xlu0 %681
    %v684 = vmul.f32 %v679, %v682
    %v685 = vrot.slane %v616, 7
    %v687 = vmul.f32 %v665, %v685
    %v688 = vadd.f32 %v684, %v687
    %v690 = vrot.slane %v688, 6
    %691 = vrot.lane.b32.xlu0 %v690, 96
    %v692 = vpop.permute.xlu0 %691
    %v693 = vsel %vm156, %v692, 0
    %695 = vmatpush.msra.mxu0 0.0
    %696 = vmatpush.msra.mxu0 0.0
    %697 = vmatpush.msra.mxu0 0.0
    %698 = vmatpush.msra.mxu0 0.0
    %699 = vmatpush.msra.mxu0 0.0
    %700 = vmatpush.msra.mxu0 0.0
    %701 = vmatpush.msra.mxu0 0.0
    %702 = vmatpush.msra.mxu0 0.0
    %703 = vmatpush.msra.mxu0 0.0
    %704 = vmatpush.msra.mxu0 0.0
    %705 = vmatpush.msra.mxu0 0.0
    %706 = vmatpush.msra.mxu0 0.0
    %707 = vmatpush.msra.mxu0 %v183
    %708 = vmatpush.msra.mxu0 %v182
    %709 = vmatpush.msra.mxu0 %v181
    %710 = vmatpush.msra.mxu0 %v180
    %711 = vmatmul.f32.gmra.mxu0 %v693
    %v712 = vpop.f32.mrf.mxu0
    %v713 = vadd.f32 0.0, %v712
    %714 = vdwg.mxu0
    %v716 = vrot.slane %v713, 1
    %v718 = vadd.f32 %v178, %v716
    %v719 = vxor.u32 %v718, 2147483648
    %v720 = vmul.f32 %v719, 1.442695
    %v721 = vpow.pop %v720
    %v722 = vadd.f32 %v721, 1.0
    %v723 = vrcp.pop %v722
    %v724 = vmul.f32 %v722, %v723
    %v725 = vsub.f32 1.0, %v724
    %v726 = vmul.f32 %v723, %v725
    %v727 = vadd.f32 %v723, %v726
    %vm728 = vweird.f32 %v722
    %vm729 = vweird.f32 %v723
    %vm730 = vmor %vm728, %vm729
    %v731 = vsel %vm730, %v723, %v727
    %v732 = vand.u32 2147483647, %v722
    %vm733 = vcmp.eq.f32.partialorder %v732, 8.507059e+37
    %v734 = vand.u32 %v722, 2147483648
    %v735 = vor.u32 1.1754944e-38, %v734
    %v736 = vsel %vm733, %v735, %v731
    %v737 = vmul.f32 1.0, %v736
    %v738 = vadd.f32 %v713, %v232
    %v740 = vrot.slane %v738, 1
    %741 = vrot.lane.b32.xlu0 %v740, 64
    %v742 = vpop.permute.xlu0 %741
    %v744 = vmul.f32 %v737, %v742
    %746 = vrot.lane.b32.xlu0 %v744, 64
    %v747 = vpop.permute.xlu0 %746
    %v749 = vadd.f32 %v178, %v747
    %v750 = vtanh.pop %v749
    %v751 = vsub.f32 1.0, %v737
    %753 = vrot.lane.b32.xlu0 %v750, 96
    %v754 = vpop.permute.xlu0 %753
    %v756 = vmul.f32 %v751, %v754
    %v757 = vrot.slane %v688, 7
    %v759 = vmul.f32 %v737, %v757
    %v760 = vadd.f32 %v756, %v759
    %762 = vrot.lane.b32.xlu0 %v760, 96
    %v763 = vpop.permute.xlu0 %762
    %vm765 = vcmask 261127
    %766 = vst.msk [vmem:[#allocation6 - $0x7] sm:$0x80] %vm765, %v763
    %v767 = vsel %vm134, %v257, %v328
    %v768 = vsel %vm136, %v767, %v400
    %v769 = vsel %vm138, %v768, %v472
    %v770 = vsel %vm140, %v769, %v544
    %v771 = vsel %vm142, %v770, %v616
    %v772 = vsel %vm144, %v771, %v688
    %v773 = vsel %vm146, %v772, %v760
    %v774 = vld [vmem:[%s7] sm:$0xff]
    %v775 = vld [vmem:[%s7 + $0x8] sm:$0xff]
    %v776 = vld [vmem:[%s7 + $0x10] sm:$0xff]
    %v777 = vld [vmem:[%s7 + $0x18] sm:$0xff]
    %v778 = vld [vmem:[%s8] sm:$0x1]
    %v780 = vperm.slane %v778, 0
    %783 = vrot.lane.b32.xlu0 %v773, 96
    %v784 = vpop.permute.xlu0 %783
    %v785 = vsel %vm156, %v784, 0
    %787 = vmatpush.msra.mxu0 0.0
    %788 = vmatpush.msra.mxu0 0.0
    %789 = vmatpush.msra.mxu0 0.0
    %790 = vmatpush.msra.mxu0 0.0
    %791 = vmatpush.msra.mxu0 0.0
    %792 = vmatpush.msra.mxu0 0.0
    %793 = vmatpush.msra.mxu0 0.0
    %794 = vmatpush.msra.mxu0 0.0
    %795 = vmatpush.msra.mxu0 0.0
    %796 = vmatpush.msra.mxu0 0.0
    %797 = vmatpush.msra.mxu0 0.0
    %798 = vmatpush.msra.mxu0 0.0
    %799 = vmatpush.msra.mxu0 %v777
    %800 = vmatpush.msra.mxu0 %v776
    %801 = vmatpush.msra.mxu0 %v775
    %802 = vmatpush.msra.mxu0 %v774
    %803 = vmatmul.f32.gmra.mxu0 %v785
    %v804 = vpop.f32.mrf.mxu0
    %v805 = vadd.f32 %v780, %v804
    %806 = vdwg.mxu0
    %807 = vmax.xlane.f32.xlu0 %v805
    %v808 = vpop.xlane.xlu0 %807
    %v809 = vsub.f32 %v805, %v808
    %v810 = vmul.f32 %v809, 1.442695
    %v811 = vpow.pop %v810
    %812 = vadd.xlane.f32.xlu0 %v811
    %v813 = vpop.xlane.xlu0 %812
    %v814 = vlog2.pop %v813
    %v815 = vmul.f32 %v814, 0.6931472
    %v816 = vsub.f32 %v809, %v815
    %817 = vst [vmem:[#allocation5] sm:$0xff] %v816
    // Predicated region
    $region42: #{tpu_custom_call.1} parent=1 // pred_check
      _
    $region43: #{tpu_custom_call.1} parent=1 // pred_check_branch
      %819 = sbr.rel (0) target = $region45
    $region44: #{tpu_custom_call.1} parent=1 // pred_region
      %821 = vsyncadd [#allocation3], 0
      %s823 = sshll.u32 [#allocation5], 4
      %s824 = int_to_ptr.vmem [resolvable:$true] %s823
      %s825 = sshll.u32 %s9, 4
      %s826 = int_to_ptr.hbm [resolvable:$true] %s825
      %828 = dma.vmem_to_hbm [thread:$0]  %s824, 128, %s826, [#allocation3]
    $region45: #{tpu_custom_call.1} parent=1 // pred_fallthru
      _
    // Predicated region
    $region46: #{tpu_custom_call.1} parent=1 // pred_check
      _
    $region47: #{tpu_custom_call.1} parent=1 // pred_check_branch
      %830 = sbr.rel (0) target = $region49
    $region48: #{tpu_custom_call.1} parent=1 // pred_region
      %832 = vsyncadd [#allocation7], 0
      %s834 = sshll.u32 [#allocation6], 4
      %s835 = int_to_ptr.vmem [resolvable:$true] %s834
      %s836 = sshll.u32 %s10, 4
      %s837 = int_to_ptr.hbm [resolvable:$true] %s836
      %839 = dma.vmem_to_hbm [thread:$0]  %s835, 16, %s837, [#allocation7]
    $region49: #{tpu_custom_call.1} parent=1 // pred_fallthru
      _
    // Predicated region
    $region50: #{tpu_custom_call.1} parent=1 // pred_check
      _
    $region51: #{tpu_custom_call.1} parent=1 // pred_check_branch
      %841 = sbr.rel (0) target = $region53
    $region52: #{tpu_custom_call.1} parent=1 // pred_region
      %843 = dma.done [#allocation3], 128
    $region53: #{tpu_custom_call.1} parent=1 // pred_fallthru
      _
    // Predicated region
    $region54: #{tpu_custom_call.1} parent=1 // pred_check
      _
    $region55: #{tpu_custom_call.1} parent=1 // pred_check_branch
      %845 = sbr.rel (0) target = $region57
    $region56: #{tpu_custom_call.1} parent=1 // pred_region
      %847 = dma.done [#allocation7], 16
    $region57: #{tpu_custom_call.1} parent=1 // pred_fallthru
      _
    %848 = vsyncpa [#allocation3], 1
    %849 = vsyncpa [#allocation7], 1
    %850 = vsyncpa [#allocation4], 1

</llo_original>
